<compile_context>
chip_gen: v7x
topology: tpu7x:2x2x1
jax: 0.10.0
libtpu: 0.0.40
codegen_flags: <defaults>
</compile_context>

<pallas_src>
import functools

import jax
import jax.numpy as jnp
from jax.experimental import pallas as pl
from jax.experimental.pallas import tpu as pltpu

EPS = 1e-12  # matches torch.nn.functional.normalize default eps


def _round_up(a: int, b: int) -> int:
    return ((a + b - 1) // b) * b


def _vmem_cap_bytes() -> int:
    """Physical VMEM per TensorCore; conservative fallback if the query fails."""
    try:
        return int(pltpu.get_tpu_info().vmem_capacity_bytes)
    except Exception:
        return 64 * 1024 * 1024  # v7x per-TC size (smallest current generation)


def _arcface_kernel(x_ref, w_ref, winv_ref, o_ref):
    # x_ref:    (tm, K)  compute dtype, rows already L2-normalized
    # w_ref:    (K, tn)  compute dtype, raw weight columns
    # winv_ref: (1, tn)  f32, 1/||w_col||
    # o_ref:    (tm, tn) out dtype
    acc = jnp.dot(x_ref[...], w_ref[...], preferred_element_type=jnp.float32)
    o_ref[...] = (acc * winv_ref[...]).astype(o_ref.dtype)


def prepare_arcface_weights(W, compute_dtype=jnp.bfloat16):
    """One-time weight preprocessing. Cache the results OUTSIDE the hot path.

    Returns (wc, w_inv): W cast to the MXU compute dtype (no padding) and the
    f32 reciprocal column norms, computed from the unquantized weights.
    """
    w32 = W.astype(jnp.float32)
    w_inv = 1.0 / jnp.maximum(jnp.sqrt(jnp.sum(w32 * w32, axis=0, keepdims=True)), EPS)
    return W.astype(compute_dtype), w_inv


@functools.partial(jax.jit, static_argnames=("tm", "tn", "out_dtype"))
def arcface_forward(x, wc, w_inv, *, tm=256, tn=2048, out_dtype=jnp.float32):
    """Fused normalize + matmul.

    x:     [B, emb]   activations (any float dtype)
    wc:    [emb, C]   weight, already cast to the compute dtype (see prepare_arcface_weights)
    w_inv: [1, C]     f32 reciprocal column norms of the original weight
    returns [B, C] cosine logits in out_dtype.
    """
    B, K = x.shape
    K2, C = wc.shape
    assert K == K2
    cdtype = wc.dtype

    # Fold the row normalization into x at cast time (x is tiny -> free), and
    # pad only to the 16-row bf16 sublane-packing boundary.
    x32 = x.astype(jnp.float32)
    x_inv = 1.0 / jnp.maximum(jnp.sqrt(jnp.sum(x32 * x32, axis=1, keepdims=True)), EPS)
    Bp = _round_up(B, 16)
    xc = jnp.pad((x32 * x_inv).astype(cdtype), ((0, Bp - B), (0, 0)))

    # Tile sizes: large & lane-dense, clamped to the problem.
    tm = min(tm, Bp)
    tn = min(tn, _round_up(C, 128))
    if tn > C:          # tiny class counts: use the full (unblocked) class axis
        tn = C
    n_b = pl.cdiv(Bp, tm)
    n_c = pl.cdiv(C, tn)

    # Grid ordering: classes outermost keeps each W column tile resident across
    # the inner batch loop (W DMA'd exactly once). If batch tiles outnumber
    # class tiles, put batch outermost so both v7x TensorCores get work.
    classes_outer = n_c >= n_b
    if classes_outer:
        grid = (n_c, n_b)
        x_map = lambda c, b: (b, 0)
        w_map = lambda c, b: (0, c)
        v_map = lambda c, b: (0, c)
        o_map = lambda c, b: (b, c)
    else:
        grid = (n_b, n_c)
        x_map = lambda b, c: (b, 0)
        w_map = lambda b, c: (0, c)
        v_map = lambda b, c: (0, c)
        o_map = lambda b, c: (b, c)

    # VMEM budget: double-buffered x / W / w_inv tiles + output tile, with
    # headroom, capped at 3/4 of the chip's physical per-core VMEM.
    c_item = jnp.dtype(cdtype).itemsize
    o_item = jnp.dtype(out_dtype).itemsize
    need = 2 * (tm * K * c_item + K * tn * c_item + tn * 4 + tm * tn * o_item)
    vmem_limit = int(min(_vmem_cap_bytes() * 3 // 4,
                         max(32 * 1024 * 1024, need + (8 << 20))))

    # Advisory cost estimate reflecting the actual streaming pattern.
    w_reads, x_reads = (1, n_c) if classes_outer else (n_b, 1)
    cost = pl.CostEstimate(
        flops=2 * B * K * C,
        transcendentals=0,
        bytes_accessed=int(w_reads * K * C * c_item
                           + x_reads * Bp * K * c_item
                           + C * 4
                           + Bp * C * o_item),
    )

    out = pl.pallas_call(
        _arcface_kernel,
        out_shape=jax.ShapeDtypeStruct((Bp, C), out_dtype),
        grid_spec=pltpu.PrefetchScalarGridSpec(
            num_scalar_prefetch=0,
            grid=grid,
            in_specs=[
                pl.BlockSpec((tm, K), x_map),   # pre-normalized x row tile, full K
                pl.BlockSpec((K, tn), w_map),   # W column tile, full K
                pl.BlockSpec((1, tn), v_map),   # 1/||w_col||
            ],
            out_specs=pl.BlockSpec((tm, tn), o_map),
        ),
        compiler_params=pltpu.CompilerParams(
            dimension_semantics=("parallel", "parallel"),
            vmem_limit_bytes=vmem_limit,
        ),
        cost_estimate=cost,
    )(xc, wc, w_inv)

    return out[:B]


def arcface_reference(x, W):
    xn = x / jnp.maximum(jnp.linalg.norm(x, axis=1, keepdims=True), EPS)
    wn = W / jnp.maximum(jnp.linalg.norm(W, axis=0, keepdims=True), EPS)
    return xn @ wn


if __name__ == "__main__":
    emb_size = 32
    output_classes = 128
    batch = 8

    key = jax.random.PRNGKey(0)
    kx, kw = jax.random.split(key)

    # Xavier-normal init of W (emb_size, output_classes): std = sqrt(2/(fan_in+fan_out)).
    std = (2.0 / (emb_size + output_classes)) ** 0.5
    W = jax.random.normal(kw, (emb_size, output_classes), dtype=jnp.float32) * std
    x = jax.random.normal(kx, (batch, emb_size), dtype=jnp.float32)

    # One-time weight preprocessing (cache wc / w_inv; not part of the per-call hot path).
    wc, w_inv = prepare_arcface_weights(W)

    out = arcface_forward(x, wc, w_inv)
    out = jax.block_until_ready(out)

    ref = arcface_reference(x, W)
    assert out.shape == (batch, output_classes)
    # bf16 MXU inputs: cosine logits live in [-1, 1]; allow ~1e-2 abs tolerance.
    assert jnp.allclose(out, ref, atol=2e-2, rtol=2e-2), "mismatch vs reference"

    print("KERNEL_OK")
</pallas_src>

<mosaic_0001>
module attributes {stable_mosaic.version = 11 : i64} {
  func.func @_arcface_kernel(%arg0: i32, %arg1: i32, %arg2: memref<16x32xbf16, #tpu.memory_space<vmem>>, %arg3: memref<32x128xbf16, #tpu.memory_space<vmem>>, %arg4: memref<1x128xf32, #tpu.memory_space<vmem>>, %arg5: memref<16x128xf32, #tpu.memory_space<vmem>>) attributes {dimension_semantics = [#tpu.dimension_semantics<parallel>, #tpu.dimension_semantics<parallel>], iteration_bounds = array<i64: 1, 1>, scalar_prefetch = 0 : i64, scratch_operands = 0 : i64, tpu.core_type = #tpu.core_type<tc>, window_params = [{transform_indices = @transform_0, window_bounds = array<i64: 16, 32>}, {transform_indices = @transform_1, window_bounds = array<i64: 32, 128>}, {transform_indices = @transform_2, window_bounds = array<i64: 1, 128>}, {transform_indices = @transform_3, window_bounds = array<i64: 16, 128>}]} {
    %c0 = arith.constant 0 : index
    %c0_0 = arith.constant 0 : index
    %0 = vector.load %arg2[%c0, %c0_0] : memref<16x32xbf16, #tpu.memory_space<vmem>>, vector<16x32xbf16>
    %c0_1 = arith.constant 0 : index
    %c0_2 = arith.constant 0 : index
    %1 = vector.load %arg3[%c0_1, %c0_2] : memref<32x128xbf16, #tpu.memory_space<vmem>>, vector<32x128xbf16>
    %cst = arith.constant dense<0.000000e+00> : vector<16x128xf32>
    %2 = tpu.matmul %0, %1, %cst {dimension_numbers = #tpu.dot_dimension_numbers<[1], [0], [0], [1], [0, 0, 1, 1], [], []>} : vector<16x32xbf16>, vector<32x128xbf16>, vector<16x128xf32> -> vector<16x128xf32>
    %c0_3 = arith.constant 0 : index
    %c0_4 = arith.constant 0 : index
    %3 = vector.load %arg4[%c0_3, %c0_4] : memref<1x128xf32, #tpu.memory_space<vmem>>, vector<1x128xf32>
    %4 = vector.broadcast %3 : vector<1x128xf32> to vector<16x128xf32>
    %5 = arith.mulf %2, %4 : vector<16x128xf32>
    %c0_5 = arith.constant 0 : index
    %c0_6 = arith.constant 0 : index
    %6 = vector.load %arg5[%c0_5, %c0_6] : memref<16x128xf32, #tpu.memory_space<vmem>>, vector<16x128xf32>
    tpu.vector_store %arg5[%c0_5, %c0_6], %5 {strides = array<i32>} : memref<16x128xf32, #tpu.memory_space<vmem>>, vector<16x128xf32>,
    return
  }
  func.func @transform_0(%arg0: i32, %arg1: i32) -> (i32, i32) {
    %c0_i32 = arith.constant 0 : i32
    %c0_i32_0 = arith.constant 0 : i32
    return %arg1, %c0_i32 : i32, i32
  }
  func.func @transform_1(%arg0: i32, %arg1: i32) -> (i32, i32) {
    %c0_i32 = arith.constant 0 : i32
    %c0_i32_0 = arith.constant 0 : i32
    return %c0_i32, %arg0 : i32, i32
  }
  func.func @transform_2(%arg0: i32, %arg1: i32) -> (i32, i32) {
    %c0_i32 = arith.constant 0 : i32
    %c0_i32_0 = arith.constant 0 : i32
    return %c0_i32, %arg0 : i32, i32
  }
  func.func @transform_3(%arg0: i32, %arg1: i32) -> (i32, i32) {
    %c0_i32 = arith.constant 0 : i32
    return %arg1, %arg0 : i32, i32
  }
}

</mosaic_0001>

<llo_original>
// kernel: arcface_forward.1
$region0: #{arcface_forward.1}
  #allocation0 [shape = 'u32[]', space=smem, size = 0x4, offset = 0x4, fixed_abs, tag = 'smem constant byte address 0x4 - core index']
  #allocation1 [shape = 'u32[144,128]{1,0:T(1,128)}', space=vmem, size = 0x12000, scoped, tag = 'internal scratch']
  %s0 = inlined_call_operand.vmem [shape: bf16[16,32], index: 0, kind: input, shape index: {}]
  %s1 = inlined_call_operand.vmem [shape: bf16[32,128], index: 1, kind: input, shape index: {}]
  %s2 = inlined_call_operand.vmem [shape: f32[1,128], index: 2, kind: input, shape index: {}]
  %s3 = inlined_call_operand.vmem [shape: f32[16,128], index: 3, kind: output, shape index: {}]
  %s4 = sld [smem:[#allocation0]]
  $region22: #{arcface_forward.1} parent=0
    _
  %s6 = ssub.s32 1, %s4
  %s7 = scalar_select 0, %s6, %s4
  // Predicated region
  $region2: #{arcface_forward.1} parent=0 // pred_check
    _
  $region3: #{arcface_forward.1} parent=0 // pred_check_branch
    %9 = sbr.rel (0) target = $region5
  $region4: #{arcface_forward.1} parent=0 // pred_region
    _
  $region5: #{arcface_forward.1} parent=0 // pred_fallthru
    _
  // Predicated region
  $region6: #{arcface_forward.1} parent=0 // pred_check
    _
  $region7: #{arcface_forward.1} parent=0 // pred_check_branch
    %11 = sbr.rel (0) target = $region9
  $region8: #{arcface_forward.1} parent=0 // pred_region
    _
  $region9: #{arcface_forward.1} parent=0 // pred_fallthru
    _
  // Predicated region
  $region10: #{arcface_forward.1} parent=0 // pred_check
    _
  $region11: #{arcface_forward.1} parent=0 // pred_check_branch
    %13 = sbr.rel (0) target = $region13
  $region12: #{arcface_forward.1} parent=0 // pred_region
    _
  $region13: #{arcface_forward.1} parent=0 // pred_fallthru
    _
  %v15 = vld [vmem:[%s0] sm:$0xf]
  %v16 = vld [vmem:[%s0 + $0x4] sm:$0xf]
  %v17 = vld [vmem:[%s1] sm:$0xf]
  %v18 = vld [vmem:[%s1 + $0x4] sm:$0xf]
  %v19 = vld [vmem:[%s1 + $0x8] sm:$0xf]
  %v20 = vld [vmem:[%s1 + $0xc] sm:$0xf]
  %v23 = vunpack.c.l.b16 %v15
  %v24 = vunpack.c.l.b16 %v16
  %v25 = vpack.c.b16 %v24, %v23
  %v30 = vunpack.c.l.b16 %v17
  %v31 = vunpack.c.l.b16 %v18
  %v32 = vunpack.c.l.b16 %v19
  %v33 = vunpack.c.l.b16 %v20
  %v34 = vpack.c.b16 %v31, %v30
  %v35 = vpack.c.b16 %v33, %v32
  %vm38 = vcmask 261120
  %v40 = vsel %vm38, %v25, 0
  %42 = vmatprep.subr.bf16.mxu0 0
  %43 = vmatpush1.bf16.msra.mxu0 %v34
  %44 = vmatprep.subr.bf16.mxu0 0
  %45 = vmatpush1.bf16.msra.mxu0 %v35
  %46 = vmatprep.subr.bf16.mxu0 0
  %47 = vmatpush1.bf16.msra.mxu0 0
  %48 = vmatprep.subr.bf16.mxu0 0
  %49 = vmatpush1.bf16.msra.mxu0 0
  %50 = vmatprep.subr.bf16.mxu0 0
  %51 = vmatpush1.bf16.msra.mxu0 0
  %52 = vmatprep.subr.bf16.mxu0 0
  %53 = vmatpush1.bf16.msra.mxu0 0
  %54 = vmatprep.subr.bf16.mxu0 0
  %55 = vmatpush1.bf16.msra.mxu0 0
  %56 = vmatprep.subr.bf16.mxu0 0
  %57 = vmatpush1.bf16.msra.mxu0 0
  %58 = vmatprep.subr.bf16.mxu0 0
  %59 = vmatpush1.bf16.msra.mxu0 0
  %60 = vmatprep.subr.bf16.mxu0 0
  %61 = vmatpush1.bf16.msra.mxu0 0
  %62 = vmatprep.subr.bf16.mxu0 0
  %63 = vmatpush1.bf16.msra.mxu0 0
  %64 = vmatprep.subr.bf16.mxu0 0
  %65 = vmatpush1.bf16.msra.mxu0 0
  %66 = vmatprep.subr.bf16.mxu0 0
  %67 = vmatpush1.bf16.msra.mxu0 0
  %68 = vmatprep.subr.bf16.mxu0 0
  %69 = vmatpush1.bf16.msra.mxu0 0
  %70 = vmatprep.subr.bf16.mxu0 0
  %71 = vmatpush1.bf16.msra.mxu0 0
  %72 = vmatprep.subr.bf16.mxu0 0
  %73 = vmatpush1.bf16.msra.mxu0 0
  %74 = vmatprep.mubr.bf16.mxu0 0
  %75 = vmatmul.mubr.bf16.gmra.mrb[0].mxu0 %v40
  %v76 = vpop.f32.mrb[0].mxu0
  %v77 = vadd.f32 0.0, %v76
  %v78 = vpop.f32.mrb[0].mxu0
  %v79 = vpop.f32.mrb[0].mxu0
  %v80 = vadd.f32 0.0, %v79
  %v81 = vpop.f32.mrb[0].mxu0
  %82 = vdwg.mxu0
  %v83 = vld [vmem:[%s2] sm:$0x1]
  %v85 = vlaneseq
  %v86 = vshrl.u32 %v85, 7
  %v87 = vsub.s32 0, %v86
  %v88 = vrot.slane %v83, %v87
  %v90 = vmul.f32 %v77, %v88
  %v91 = vmul.f32 %v80, %v88
  %92 = vst [vmem:[%s3] sm:$0xff] %v90
  %93 = vst [vmem:[%s3 + $0x8] sm:$0xff] %v91
  // Predicated region
  $region14: #{arcface_forward.1} parent=0 // pred_check
    _
  $region15: #{arcface_forward.1} parent=0 // pred_check_branch
    %95 = sbr.rel (0) target = $region17
  $region16: #{arcface_forward.1} parent=0 // pred_region
    _
  $region17: #{arcface_forward.1} parent=0 // pred_fallthru
    _
  // Predicated region
  $region18: #{arcface_forward.1} parent=0 // pred_check
    _
  $region19: #{arcface_forward.1} parent=0 // pred_check_branch
    %97 = sbr.rel (0) target = $region21
  $region20: #{arcface_forward.1} parent=0 // pred_region
    _
  $region21: #{arcface_forward.1} parent=0 // pred_fallthru
    _

</llo_original>
